<compile_context>
chip_gen: v5e
topology: v5e:2x2
jax: 0.10.0
libtpu: 0.0.40
codegen_flags: <defaults>
</compile_context>

<pallas_src>
import functools

import jax
import jax.numpy as jnp
from jax.experimental import pallas as pl
from jax.experimental.pallas import tpu as pltpu


def _round_up(x, m):
    return ((x + m - 1) // m) * m


# ---------------------------------------------------------------------------
# Kernel: 4 narrow bf16 matmuls (f32 accumulate) per (TILE_R, ...) row tile.
# ---------------------------------------------------------------------------
def _qtran_mix_kernel(xh_ref, xa_ref, w_in_ref, w_small_ref, b_ref, out_ref,
                      *, NE, KZ, M):
    f32 = jnp.float32
    bf16 = jnp.bfloat16

    # (TR, N*H) | (TR, N*A) -> (TR, N*(H+A)).  Both tiles already sit in VMEM;
    # the lane concat lands in vld/vst/VALU slots, which have slack when the
    # MXU is the binding unit.
    xcat = jnp.concatenate(
        [xh_ref[...].astype(bf16), xa_ref[...].astype(bf16)], axis=-1)

    # Dot 1: encoder layer 1 (block-diag w1, all agents at once) fused
    # column-wise with the state-value branch's first layer (row-stacked wv1,
    # which also realizes the agent-sum of hidden states).
    zs = jnp.dot(xcat, w_in_ref[...], preferred_element_type=f32)
    zs = jnp.maximum(zs + b_ref[0:1, :], 0.0)                    # (TR, NE + M)

    s = zs[:, NE:NE + M]                                         # value branch

    # Dot 2: encoder layer 2 folded with joint_action_value layer 1
    # (w2 @ wq1; agent-sum via row stacking).  Rows NE..KZ-1 of the packed
    # weight are zero, so the sublane-aligned zs[:, :KZ] slice is exact.
    t = jnp.dot(zs[:, :KZ].astype(bf16), w_small_ref[0:KZ, :],
                preferred_element_type=f32)
    t = jnp.maximum(t + b_ref[1:2, 0:M], 0.0)                    # (TR, M)

    # Dot 3: joint_action_value layer 2.
    t2 = jnp.dot(t.astype(bf16), w_small_ref[KZ:KZ + M, :],
                 preferred_element_type=f32)
    t2 = jnp.maximum(t2 + b_ref[2:3, 0:M], 0.0)                  # (TR, M)

    # Dot 4: both 1-wide heads in one pass (q in column 0, v in column 1; the
    # head weights are zero-padded to M output lanes so they pack with the
    # other M-wide weights).
    ts = jnp.concatenate([t2.astype(bf16), s.astype(bf16)], axis=-1)   # (TR, 2M)
    th = jnp.dot(ts, w_small_ref[KZ + M:KZ + 3 * M, :],
                 preferred_element_type=f32)
    out_ref[...] = (th[:, 0:2] + b_ref[3:4, 0:2]).astype(out_ref.dtype)


# ---------------------------------------------------------------------------
# One-time weight folding (hoist out of the forward path; redo per param update)
# ---------------------------------------------------------------------------
def prepare_kernel_params(p, N, H, A):
    """Fold agent axis + linear-layer compositions into 3 packed operands."""
    f32 = jnp.float32
    E = H + A
    M = p["wq1"].shape[1]
    NE = N * E
    assert p["w1"].shape == (E, E)
    assert M % 8 == 0, "mixing_hidden_dim must be a multiple of 8 for packing"
    KZ = _round_up(NE, 8)
    assert KZ - NE <= M, "cannot sublane-pad z slice inside the fused layer-1 output"

    w1 = p["w1"].astype(f32)
    eye = jnp.eye(N, dtype=f32)
    w1h_bd = jnp.kron(eye, w1[:H])                       # (N*H, NE) block-diag
    w1a_bd = jnp.kron(eye, w1[H:])                       # (N*A, NE) block-diag
    wv1_s = jnp.tile(p["wv1"].astype(f32), (N, 1))       # (N*H, M) row-stack == agent-sum

    # W_in rows: [xh rows (N*H) ; xa rows (N*A)], cols: [encoder-L1 (NE) | value-L1 (M)].
    w_in = jnp.concatenate([
        jnp.concatenate([w1h_bd, wv1_s], axis=1),
        jnp.concatenate([w1a_bd, jnp.zeros((N * A, M), f32)], axis=1),
    ], axis=0)                                           # (N*(H+A), NE + M)

    # Encoder L2 folded with value-net L1 (no ReLU between them); zero rows pad
    # NE -> KZ so the kernel can take a sublane-aligned z slice.
    w2q1 = p["w2"].astype(f32) @ p["wq1"].astype(f32)    # (E, M)
    w_mid = jnp.concatenate(
        [jnp.tile(w2q1, (N, 1)), jnp.zeros((KZ - NE, M), f32)], axis=0)   # (KZ, M)

    # Fused 2-wide heads, zero-padded to M output lanes: col 0 = q, col 1 = v.
    w_head = jnp.zeros((2 * M, M), f32)
    w_head = w_head.at[:M, 0].set(p["wq3"][:, 0].astype(f32))
    w_head = w_head.at[M:, 1].set(p["wv2"][:, 0].astype(f32))

    # Pack the three M-wide weights row-wise (all offsets multiples of 8).
    w_small = jnp.concatenate([w_mid, p["wq2"].astype(f32), w_head], axis=0)  # (KZ+3M, M)

    # Pack all biases into one (4, NE+M) array; every slice starts at lane 0.
    b_in = jnp.concatenate([jnp.tile(p["b1"].astype(f32), (1, N)),
                            p["bv1"].astype(f32)], axis=1)                    # (1, NE+M)
    b_mid = N * (p["b2"].astype(f32) @ p["wq1"].astype(f32)) + p["bq1"].astype(f32)
    b_qv = jnp.concatenate([p["bq3"], p["bv2"]], axis=1).astype(f32)          # (1, 2)

    def pad_row(row, width):
        return jnp.pad(row, ((0, 0), (0, width - row.shape[1])))

    width = NE + M
    b_pack = jnp.concatenate(
        [b_in, pad_row(b_mid, width), pad_row(p["bq2"].astype(f32), width),
         pad_row(b_qv, width)], axis=0)                                        # (4, NE+M)

    return dict(w_in=w_in.astype(jnp.bfloat16),
                w_small=w_small.astype(jnp.bfloat16),
                b_pack=b_pack)


# ---------------------------------------------------------------------------
# Forward wrapper
# ---------------------------------------------------------------------------
@functools.partial(jax.jit, static_argnames=("tile_r",))
def qtran_mixing_forward(hidden_n, onehot_a_n, kparams, *, tile_r=2048):
    """hidden_n: (B, T, N, H), onehot_a_n: (B, T, N, A) -> (q (B,T,1), v (B,T,1))."""
    B, T, N, H = hidden_n.shape
    A = onehot_a_n.shape[-1]
    R = B * T

    w_in, w_small, b_pack = kparams["w_in"], kparams["w_small"], kparams["b_pack"]
    M = w_small.shape[1]
    NE = w_in.shape[1] - M
    KZ = w_small.shape[0] - 3 * M

    # Free, contiguous reshapes — no transpose / extra HBM pass in the wrapper.
    xh = hidden_n.reshape(R, N * H)
    xa = onehot_a_n.reshape(R, N * A)

    # Row tile: large (amortizes ~0.35us/step), but for R > 16 always an even
    # number of grid steps (>=2) so v7x's two TensorCores split the rows.
    if R <= 16:
        tile = max(8, _round_up(R, 8))
    else:
        steps = max(2, -(-R // tile_r))
        steps += steps % 2
        tile = max(8, _round_up(-(-R // steps), 8))
    grid = (-(-R // tile),)

    kernel = functools.partial(_qtran_mix_kernel, NE=NE, KZ=KZ, M=M)

    out = pl.pallas_call(
        kernel,
        grid=grid,
        in_specs=[
            pl.BlockSpec((tile, N * H), lambda i: (i, 0)),
            pl.BlockSpec((tile, N * A), lambda i: (i, 0)),
            # Resident operands: full-shape blocks, constant index_map.
            pl.BlockSpec(w_in.shape, lambda i: (0, 0)),
            pl.BlockSpec(w_small.shape, lambda i: (0, 0)),
            pl.BlockSpec(b_pack.shape, lambda i: (0, 0)),
        ],
        out_specs=pl.BlockSpec((tile, 2), lambda i: (i, 0)),
        out_shape=jax.ShapeDtypeStruct((R, 2), jnp.float32),
        compiler_params=pltpu.CompilerParams(
            dimension_semantics=("parallel",),       # v7x: shard rows over 2 TCs
            vmem_limit_bytes=32 * 1024 * 1024,       # few MiB actually used
        ),
    )(xh, xa, w_in, w_small, b_pack)

    q_joint = out[:, 0:1].reshape(B, T, 1)
    v_joint = out[:, 1:2].reshape(B, T, 1)
    return q_joint, v_joint


# ---------------------------------------------------------------------------
# Parameters + pure-JAX reference (mirrors the PyTorch module)
# ---------------------------------------------------------------------------
def init_params(key, N, hidden_dim, action_dim, mixing_hidden_dim):
    E = hidden_dim + action_dim
    M = mixing_hidden_dim

    def mk(k, shape, scale=0.1):
        return scale * jax.random.normal(k, shape, dtype=jnp.float32)

    ks = jax.random.split(key, 14)
    return dict(
        w1=mk(ks[0], (E, E)),  b1=mk(ks[1], (1, E)),
        w2=mk(ks[2], (E, E)),  b2=mk(ks[3], (1, E)),
        wq1=mk(ks[4], (E, M)), bq1=mk(ks[5], (1, M)),
        wq2=mk(ks[6], (M, M)), bq2=mk(ks[7], (1, M)),
        wq3=mk(ks[8], (M, 1)), bq3=mk(ks[9], (1, 1)),
        wv1=mk(ks[10], (hidden_dim, M)), bv1=mk(ks[11], (1, M)),
        wv2=mk(ks[12], (M, 1)),          bv2=mk(ks[13], (1, 1)),
    )


def reference_forward(hidden_n, onehot_a_n, p):
    B, T, N, H = hidden_n.shape
    R = B * T
    hid = hidden_n.reshape(R, N, H).astype(jnp.float32)
    act = onehot_a_n.reshape(R, N, -1).astype(jnp.float32)
    x = jnp.concatenate([hid, act], axis=-1)                       # (R, N, E)
    y = jnp.maximum(x @ p["w1"] + p["b1"], 0.0) @ p["w2"] + p["b2"]
    input_q = y.sum(axis=1)                                        # (R, E)
    input_v = hid.sum(axis=1)                                      # (R, H)
    t = jnp.maximum(input_q @ p["wq1"] + p["bq1"], 0.0)
    t = jnp.maximum(t @ p["wq2"] + p["bq2"], 0.0)
    q = (t @ p["wq3"] + p["bq3"]).reshape(B, T, 1)
    s = jnp.maximum(input_v @ p["wv1"] + p["bv1"], 0.0)
    v = (s @ p["wv2"] + p["bv2"]).reshape(B, T, 1)
    return q, v


# ---------------------------------------------------------------------------
# Test
# ---------------------------------------------------------------------------
if __name__ == "__main__":
    batch_size = 2
    max_episode_len = 4
    n_predator = 3
    rnn_hidden_dim = 32
    action_dim = 4
    mixing_hidden_dim = 32

    key = jax.random.PRNGKey(0)
    k_h, k_a, k_p, k_h2, k_a2 = jax.random.split(key, 5)

    hidden_n = jax.random.normal(
        k_h, (batch_size, max_episode_len, n_predator, rnn_hidden_dim), dtype=jnp.float32)
    a_idx = jax.random.randint(
        k_a, (batch_size, max_episode_len, n_predator), 0, action_dim)
    onehot_a_n = jax.nn.one_hot(a_idx, action_dim, dtype=jnp.float32)

    params = init_params(k_p, n_predator, rnn_hidden_dim, action_dim, mixing_hidden_dim)
    # Weight folding hoisted out of the forward path (done once, reused below).
    kparams = prepare_kernel_params(params, n_predator, rnn_hidden_dim, action_dim)
    jax.block_until_ready(kparams)

    # bf16 MXU operands (f32 accumulation) -> compare against the f32 reference
    # at ~1e-2 level tolerance.
    TOL = dict(atol=2e-2, rtol=2e-2)

    # Test 1: tiny R = 8 (single 8-row tile).
    q1, v1 = qtran_mixing_forward(hidden_n, onehot_a_n, kparams, tile_r=2048)
    jax.block_until_ready((q1, v1))
    q1_ref, v1_ref = reference_forward(hidden_n, onehot_a_n, params)
    assert q1.shape == (batch_size, max_episode_len, 1)
    assert v1.shape == (batch_size, max_episode_len, 1)
    assert jnp.allclose(q1, q1_ref, **TOL)
    assert jnp.allclose(v1, v1_ref, **TOL)

    # Test 2: R = 550 rows.
    #   tile_r=2048 -> 2 even grid steps (v7x two-TC path), ragged last tile.
    #   tile_r=256  -> 4 grid steps, ragged last tile.
    T2 = 275
    hidden2 = jax.random.normal(
        k_h2, (batch_size, T2, n_predator, rnn_hidden_dim), dtype=jnp.float32)
    a_idx2 = jax.random.randint(k_a2, (batch_size, T2, n_predator), 0, action_dim)
    onehot2 = jax.nn.one_hot(a_idx2, action_dim, dtype=jnp.float32)
    q2_ref, v2_ref = reference_forward(hidden2, onehot2, params)

    for tr in (2048, 256):
        q2, v2 = qtran_mixing_forward(hidden2, onehot2, kparams, tile_r=tr)
        jax.block_until_ready((q2, v2))
        assert jnp.allclose(q2, q2_ref, **TOL), f"q mismatch (tile_r={tr})"
        assert jnp.allclose(v2, v2_ref, **TOL), f"v mismatch (tile_r={tr})"

    print("KERNEL_OK")
</pallas_src>

<mosaic_0001>
module attributes {stable_mosaic.version = 11 : i64} {
  func.func @_qtran_mix_kernel(%arg0: i32, %arg1: memref<8x96xf32, #tpu.memory_space<vmem>>, %arg2: memref<8x12xf32, #tpu.memory_space<vmem>>, %arg3: memref<108x140xbf16, #tpu.memory_space<vmem>>, %arg4: memref<208x32xbf16, #tpu.memory_space<vmem>>, %arg5: memref<4x140xf32, #tpu.memory_space<vmem>>, %arg6: memref<8x2xf32, #tpu.memory_space<vmem>>) attributes {dimension_semantics = [#tpu.dimension_semantics<parallel>], iteration_bounds = array<i64: 1>, scalar_prefetch = 0 : i64, scratch_operands = 0 : i64, tpu.core_type = #tpu.core_type<tc>, window_params = [{transform_indices = @transform_0, window_bounds = array<i64: 8, 96>}, {transform_indices = @transform_1, window_bounds = array<i64: 8, 12>}, {pipeline_mode = #tpu.pipeline_mode<synchronous>, transform_indices = @transform_2, window_bounds = array<i64: 108, 140>}, {pipeline_mode = #tpu.pipeline_mode<synchronous>, transform_indices = @transform_3, window_bounds = array<i64: 208, 32>}, {pipeline_mode = #tpu.pipeline_mode<synchronous>, transform_indices = @transform_4, window_bounds = array<i64: 4, 140>}, {transform_indices = @transform_5, window_bounds = array<i64: 8, 2>}]} {
    %c0 = arith.constant 0 : index
    %c0_0 = arith.constant 0 : index
    %0 = vector.load %arg1[%c0, %c0_0] : memref<8x96xf32, #tpu.memory_space<vmem>>, vector<8x96xf32>
    %1 = arith.truncf %0 : vector<8x96xf32> to vector<8x96xbf16>
    %c0_1 = arith.constant 0 : index
    %c0_2 = arith.constant 0 : index
    %2 = vector.load %arg2[%c0_1, %c0_2] : memref<8x12xf32, #tpu.memory_space<vmem>>, vector<8x12xf32>
    %3 = arith.truncf %2 : vector<8x12xf32> to vector<8x12xbf16>
    %4 = tpu.concatenate %1, %3 in 1 : vector<8x96xbf16>, vector<8x12xbf16> -> vector<8x108xbf16>
    %c0_3 = arith.constant 0 : index
    %c0_4 = arith.constant 0 : index
    %5 = vector.load %arg3[%c0_3, %c0_4] : memref<108x140xbf16, #tpu.memory_space<vmem>>, vector<108x140xbf16>
    %cst = arith.constant dense<0.000000e+00> : vector<8x140xf32>
    %6 = tpu.matmul %4, %5, %cst {dimension_numbers = #tpu.dot_dimension_numbers<[1], [0], [0], [1], [0, 0, 1, 1], [], []>} : vector<8x108xbf16>, vector<108x140xbf16>, vector<8x140xf32> -> vector<8x140xf32>
    %c0_5 = arith.constant 0 : index
    %c0_6 = arith.constant 0 : index
    %7 = vector.load %arg5[%c0_5, %c0_6] : memref<4x140xf32, #tpu.memory_space<vmem>>, vector<1x140xf32>
    %8 = vector.broadcast %7 : vector<1x140xf32> to vector<8x140xf32>
    %9 = arith.addf %6, %8 : vector<8x140xf32>
    %cst_7 = arith.constant 0.000000e+00 : f32
    %10 = vector.broadcast %cst_7 : f32 to vector<8x140xf32>
    %11 = arith.maximumf %9, %10 : vector<8x140xf32>
    %12 = vector.extract_strided_slice %11 {offsets = [0, 108], sizes = [8, 32], strides = [1, 1]} : vector<8x140xf32> to vector<8x32xf32>
    %13 = vector.extract_strided_slice %11 {offsets = [0, 0], sizes = [8, 112], strides = [1, 1]} : vector<8x140xf32> to vector<8x112xf32>
    %14 = arith.truncf %13 : vector<8x112xf32> to vector<8x112xbf16>
    %c0_8 = arith.constant 0 : index
    %c0_9 = arith.constant 0 : index
    %15 = vector.load %arg4[%c0_8, %c0_9] : memref<208x32xbf16, #tpu.memory_space<vmem>>, vector<112x32xbf16>
    %cst_10 = arith.constant dense<0.000000e+00> : vector<8x32xf32>
    %16 = tpu.matmul %14, %15, %cst_10 {dimension_numbers = #tpu.dot_dimension_numbers<[1], [0], [0], [1], [0, 0, 1, 1], [], []>} : vector<8x112xbf16>, vector<112x32xbf16>, vector<8x32xf32> -> vector<8x32xf32>
    %c1 = arith.constant 1 : index
    %c0_11 = arith.constant 0 : index
    %17 = vector.load %arg5[%c1, %c0_11] : memref<4x140xf32, #tpu.memory_space<vmem>>, vector<1x32xf32>
    %18 = vector.broadcast %17 : vector<1x32xf32> to vector<8x32xf32>
    %19 = arith.addf %16, %18 : vector<8x32xf32>
    %cst_12 = arith.constant 0.000000e+00 : f32
    %20 = vector.broadcast %cst_12 : f32 to vector<8x32xf32>
    %21 = arith.maximumf %19, %20 : vector<8x32xf32>
    %22 = arith.truncf %21 : vector<8x32xf32> to vector<8x32xbf16>
    %c112 = arith.constant 112 : index
    %c0_13 = arith.constant 0 : index
    %23 = vector.load %arg4[%c112, %c0_13] : memref<208x32xbf16, #tpu.memory_space<vmem>>, vector<32x32xbf16>
    %cst_14 = arith.constant dense<0.000000e+00> : vector<8x32xf32>
    %24 = tpu.matmul %22, %23, %cst_14 {dimension_numbers = #tpu.dot_dimension_numbers<[1], [0], [0], [1], [0, 0, 1, 1], [], []>} : vector<8x32xbf16>, vector<32x32xbf16>, vector<8x32xf32> -> vector<8x32xf32>
    %c2 = arith.constant 2 : index
    %c0_15 = arith.constant 0 : index
    %25 = vector.load %arg5[%c2, %c0_15] : memref<4x140xf32, #tpu.memory_space<vmem>>, vector<1x32xf32>
    %26 = vector.broadcast %25 : vector<1x32xf32> to vector<8x32xf32>
    %27 = arith.addf %24, %26 : vector<8x32xf32>
    %cst_16 = arith.constant 0.000000e+00 : f32
    %28 = vector.broadcast %cst_16 : f32 to vector<8x32xf32>
    %29 = arith.maximumf %27, %28 : vector<8x32xf32>
    %30 = arith.truncf %29 : vector<8x32xf32> to vector<8x32xbf16>
    %31 = arith.truncf %12 : vector<8x32xf32> to vector<8x32xbf16>
    %32 = tpu.concatenate %30, %31 in 1 : vector<8x32xbf16>, vector<8x32xbf16> -> vector<8x64xbf16>
    %c144 = arith.constant 144 : index
    %c0_17 = arith.constant 0 : index
    %33 = vector.load %arg4[%c144, %c0_17] : memref<208x32xbf16, #tpu.memory_space<vmem>>, vector<64x32xbf16>
    %cst_18 = arith.constant dense<0.000000e+00> : vector<8x32xf32>
    %34 = tpu.matmul %32, %33, %cst_18 {dimension_numbers = #tpu.dot_dimension_numbers<[1], [0], [0], [1], [0, 0, 1, 1], [], []>} : vector<8x64xbf16>, vector<64x32xbf16>, vector<8x32xf32> -> vector<8x32xf32>
    %35 = vector.extract_strided_slice %34 {offsets = [0, 0], sizes = [8, 2], strides = [1, 1]} : vector<8x32xf32> to vector<8x2xf32>
    %c3 = arith.constant 3 : index
    %c0_19 = arith.constant 0 : index
    %36 = vector.load %arg5[%c3, %c0_19] : memref<4x140xf32, #tpu.memory_space<vmem>>, vector<1x2xf32>
    %37 = vector.broadcast %36 : vector<1x2xf32> to vector<8x2xf32>
    %38 = arith.addf %35, %37 : vector<8x2xf32>
    %c0_20 = arith.constant 0 : index
    %c0_21 = arith.constant 0 : index
    %39 = vector.load %arg6[%c0_20, %c0_21] : memref<8x2xf32, #tpu.memory_space<vmem>>, vector<8x2xf32>
    tpu.vector_store %arg6[%c0_20, %c0_21], %38 {strides = array<i32>} : memref<8x2xf32, #tpu.memory_space<vmem>>, vector<8x2xf32>,
    return
  }
  func.func @transform_0(%arg0: i32) -> (i32, i32) {
    %c0_i32 = arith.constant 0 : i32
    %c0_i32_0 = arith.constant 0 : i32
    return %arg0, %c0_i32 : i32, i32
  }
  func.func @transform_1(%arg0: i32) -> (i32, i32) {
    %c0_i32 = arith.constant 0 : i32
    %c0_i32_0 = arith.constant 0 : i32
    return %arg0, %c0_i32 : i32, i32
  }
  func.func @transform_2(%arg0: i32) -> (i32, i32) {
    %c0_i32 = arith.constant 0 : i32
    %c0_i32_0 = arith.constant 0 : i32
    %c0_i32_1 = arith.constant 0 : i32
    return %c0_i32, %c0_i32_0 : i32, i32
  }
  func.func @transform_3(%arg0: i32) -> (i32, i32) {
    %c0_i32 = arith.constant 0 : i32
    %c0_i32_0 = arith.constant 0 : i32
    %c0_i32_1 = arith.constant 0 : i32
    return %c0_i32, %c0_i32_0 : i32, i32
  }
  func.func @transform_4(%arg0: i32) -> (i32, i32) {
    %c0_i32 = arith.constant 0 : i32
    %c0_i32_0 = arith.constant 0 : i32
    %c0_i32_1 = arith.constant 0 : i32
    return %c0_i32, %c0_i32_0 : i32, i32
  }
  func.func @transform_5(%arg0: i32) -> (i32, i32) {
    %c0_i32 = arith.constant 0 : i32
    %c0_i32_0 = arith.constant 0 : i32
    return %arg0, %c0_i32 : i32, i32
  }
}

</mosaic_0001>

<llo_original>
// kernel: qtran_mixing_forward.1
$region0: #{qtran_mixing_forward.1}
  #allocation0 [shape = 'u32[]', space=smem, size = 0x4, offset = 0x4, fixed_abs, tag = 'smem constant byte address 0x4 - core index']
  #allocation1 [shape = 'u32[72,128]{1,0:T(1,128)}', space=vmem, size = 0x9000, scoped, tag = 'internal scratch']
  %s0 = inlined_call_operand.vmem [shape: f32[8,96], index: 0, kind: input, shape index: {}]
  %s1 = inlined_call_operand.vmem [shape: f32[8,12], index: 1, kind: input, shape index: {}]
  %s2 = inlined_call_operand.vmem [shape: bf16[108,140], index: 2, kind: input, shape index: {}]
  %s3 = inlined_call_operand.vmem [shape: bf16[208,32], index: 3, kind: input, shape index: {}]
  %s4 = inlined_call_operand.vmem [shape: f32[4,140], index: 4, kind: input, shape index: {}]
  %s5 = inlined_call_operand.vmem [shape: f32[8,2], index: 5, kind: output, shape index: {}]
  %s6 = sld [smem:[#allocation0]]
  $region30: #{qtran_mixing_forward.1} parent=0
    _
  %s8 = ssub.s32 1, %s6
  %s9 = scalar_select 0, %s8, %s6
  // Predicated region
  $region2: #{qtran_mixing_forward.1} parent=0 // pred_check
    _
  $region3: #{qtran_mixing_forward.1} parent=0 // pred_check_branch
    %11 = sbr.rel (0) target = $region5
  $region4: #{qtran_mixing_forward.1} parent=0 // pred_region
    _
  $region5: #{qtran_mixing_forward.1} parent=0 // pred_fallthru
    _
  // Predicated region
  $region6: #{qtran_mixing_forward.1} parent=0 // pred_check
    _
  $region7: #{qtran_mixing_forward.1} parent=0 // pred_check_branch
    %13 = sbr.rel (0) target = $region9
  $region8: #{qtran_mixing_forward.1} parent=0 // pred_region
    _
  $region9: #{qtran_mixing_forward.1} parent=0 // pred_fallthru
    _
  // Predicated region
  $region10: #{qtran_mixing_forward.1} parent=0 // pred_check
    _
  $region11: #{qtran_mixing_forward.1} parent=0 // pred_check_branch
    %15 = sbr.rel (0) target = $region13
  $region12: #{qtran_mixing_forward.1} parent=0 // pred_region
    _
  $region13: #{qtran_mixing_forward.1} parent=0 // pred_fallthru
    _
  // Predicated region
  $region14: #{qtran_mixing_forward.1} parent=0 // pred_check
    _
  $region15: #{qtran_mixing_forward.1} parent=0 // pred_check_branch
    %17 = sbr.rel (0) target = $region17
  $region16: #{qtran_mixing_forward.1} parent=0 // pred_region
    _
  $region17: #{qtran_mixing_forward.1} parent=0 // pred_fallthru
    _
  // Predicated region
  $region18: #{qtran_mixing_forward.1} parent=0 // pred_check
    _
  $region19: #{qtran_mixing_forward.1} parent=0 // pred_check_branch
    %19 = sbr.rel (0) target = $region21
  $region20: #{qtran_mixing_forward.1} parent=0 // pred_region
    _
  $region21: #{qtran_mixing_forward.1} parent=0 // pred_fallthru
    _
  %v21 = vld [vmem:[%s0] sm:$0xff]
  %v22 = vpack.c.bf16 %v21, %v21
  %v23 = vld [vmem:[%s1] sm:$0xff]
  %v24 = vpack.c.bf16 %v23, %v23
  %v26 = vunpack.c.l.b16 %v24
  %v27 = vpack.c.b16 %v26, %v26
  %28 = vrot.lane.b32.xlu0 %v27, 96
  %v29 = vpop.permute.xlu0 %28
  %vm30 = vcmask 785408
  %v33 = vsel %vm30, %v22, %v29
  %v34 = vld [vmem:[%s2] sm:$0xff]
  %v35 = vld [vmem:[%s2 + $0x8] sm:$0xff]
  %v36 = vld [vmem:[%s2 + $0x10] sm:$0xff]
  %v37 = vld [vmem:[%s2 + $0x18] sm:$0xff]
  %v38 = vld [vmem:[%s2 + $0x20] sm:$0xff]
  %v39 = vld [vmem:[%s2 + $0x28] sm:$0xff]
  %v40 = vld [vmem:[%s2 + $0x30] sm:$0xff]
  %v41 = vld [vmem:[%s2 + $0x38] sm:$0xff]
  %v42 = vld [vmem:[%s2 + $0x40] sm:$0xff]
  %v43 = vld [vmem:[%s2 + $0x48] sm:$0xff]
  %v44 = vld [vmem:[%s2 + $0x50] sm:$0xff]
  %v45 = vld [vmem:[%s2 + $0x58] sm:$0xff]
  %v46 = vld [vmem:[%s2 + $0x60] sm:$0xff]
  %v47 = vld [vmem:[%s2 + $0x68] sm:$0x33]
  %v48 = vld [vmem:[%s4] ss:$4 sm:$0x3]
  %v50 = vperm.slane %v48, 0
  %v51 = vperm.slane %v48, 1
  %v68 = vunpack.c.l.b16 %v34
  %v69 = vunpack.c.h.b16 %v34
  %v70 = vunpack.c.l.b16 %v35
  %v71 = vunpack.c.h.b16 %v35
  %v72 = vunpack.c.l.b16 %v36
  %v73 = vunpack.c.h.b16 %v36
  %v74 = vunpack.c.l.b16 %v37
  %v75 = vunpack.c.h.b16 %v37
  %v76 = vunpack.c.l.b16 %v38
  %v77 = vunpack.c.h.b16 %v38
  %v78 = vunpack.c.l.b16 %v39
  %v79 = vunpack.c.h.b16 %v39
  %v80 = vunpack.c.l.b16 %v40
  %v81 = vunpack.c.h.b16 %v40
  %v82 = vunpack.c.l.b16 %v41
  %v83 = vunpack.c.h.b16 %v41
  %v84 = vunpack.c.l.b16 %v42
  %v85 = vunpack.c.h.b16 %v42
  %v86 = vunpack.c.l.b16 %v43
  %v87 = vunpack.c.h.b16 %v43
  %v88 = vunpack.c.l.b16 %v44
  %v89 = vunpack.c.h.b16 %v44
  %v90 = vunpack.c.l.b16 %v45
  %v91 = vunpack.c.h.b16 %v45
  %v92 = vunpack.c.l.b16 %v46
  %v93 = vunpack.c.h.b16 %v46
  %v94 = vunpack.c.l.b16 %v47
  %v95 = vunpack.c.h.b16 %v47
  %v96 = vpack.c.b16 %v70, %v68
  %v97 = vpack.c.b16 %v71, %v69
  %v98 = vpack.c.b16 %v74, %v72
  %v99 = vpack.c.b16 %v75, %v73
  %v100 = vpack.c.b16 %v78, %v76
  %v101 = vpack.c.b16 %v79, %v77
  %v102 = vpack.c.b16 %v82, %v80
  %v103 = vpack.c.b16 %v83, %v81
  %v104 = vpack.c.b16 %v86, %v84
  %v105 = vpack.c.b16 %v87, %v85
  %v106 = vpack.c.b16 %v90, %v88
  %v107 = vpack.c.b16 %v91, %v89
  %v108 = vpack.c.b16 %v94, %v92
  %v109 = vpack.c.b16 %v95, %v93
  %vm122 = vcmask 883712
  %v123 = vsel %vm122, %v33, 0
  %vm125 = vcmask 1045504
  %v127 = vsel %vm125, %v108, 0
  %v130 = vsel %vm125, %v109, 0
  %132 = vmatpush.bf16.msra.mxu0 0
  %133 = vmatpush.bf16.msra.mxu0 %v127
  %134 = vmatpush.bf16.msra.mxu0 %v106
  %135 = vmatpush.bf16.msra.mxu0 %v104
  %136 = vmatpush.bf16.msra.mxu0 %v102
  %137 = vmatpush.bf16.msra.mxu0 %v100
  %138 = vmatpush.bf16.msra.mxu0 %v98
  %139 = vmatpush.bf16.msra.mxu0 %v96
  %140 = vmatmul.bf16.gmra.mxu0 %v123
  %v141 = vpop.f32.mrf.mxu0
  %v142 = vadd.f32 %v50, %v141
  %v143 = vpop.f32.mrf.mxu0
  %144 = vdwg.mxu0
  %145 = vmatpush.bf16.msra.mxu0 0
  %146 = vmatpush.bf16.msra.mxu0 %v130
  %147 = vmatpush.bf16.msra.mxu0 %v107
  %148 = vmatpush.bf16.msra.mxu0 %v105
  %149 = vmatpush.bf16.msra.mxu0 %v103
  %150 = vmatpush.bf16.msra.mxu0 %v101
  %151 = vmatpush.bf16.msra.mxu0 %v99
  %152 = vmatpush.bf16.msra.mxu0 %v97
  %153 = vmatmul.bf16.gmra.mxu0 %v123
  %v154 = vpop.f32.mrf.mxu0
  %v155 = vadd.f32 %v51, %v154
  %v156 = vpop.f32.mrf.mxu0
  %157 = vdwg.mxu0
  %v158 = vmax.f32 %v142, 0.0
  %v159 = vmax.f32 %v155, 0.0
  %v160 = vpack.c.bf16 %v158, %v158
  %v161 = vld [vmem:[%s3] sm:$0xf]
  %v162 = vld [vmem:[%s3 + $0x4] sm:$0xf]
  %v163 = vld [vmem:[%s3 + $0x8] sm:$0xf]
  %v164 = vld [vmem:[%s3 + $0xc] sm:$0xf]
  %v165 = vld [vmem:[%s3 + $0x10] sm:$0xf]
  %v166 = vld [vmem:[%s3 + $0x14] sm:$0xf]
  %v167 = vld [vmem:[%s3 + $0x18] sm:$0xf]
  %v168 = vld [vmem:[%s3 + $0x1c] sm:$0xf]
  %v169 = vld [vmem:[%s3 + $0x20] sm:$0xf]
  %v170 = vld [vmem:[%s3 + $0x24] sm:$0xf]
  %v171 = vld [vmem:[%s3 + $0x28] sm:$0xf]
  %v172 = vld [vmem:[%s3 + $0x2c] sm:$0xf]
  %v173 = vld [vmem:[%s3 + $0x30] sm:$0xf]
  %v174 = vld [vmem:[%s3 + $0x34] sm:$0xf]
  %v175 = vld [vmem:[%s4 + $0x1] sm:$0x1]
  %v176 = vperm.slane %v175, 0
  %v191 = vunpack.c.l.b16 %v161
  %v192 = vunpack.c.l.b16 %v162
  %v193 = vunpack.c.l.b16 %v163
  %v194 = vunpack.c.l.b16 %v164
  %v195 = vunpack.c.l.b16 %v165
  %v196 = vunpack.c.l.b16 %v166
  %v197 = vunpack.c.l.b16 %v167
  %v198 = vunpack.c.l.b16 %v168
  %v199 = vunpack.c.l.b16 %v169
  %v200 = vunpack.c.l.b16 %v170
  %v201 = vunpack.c.l.b16 %v171
  %v202 = vunpack.c.l.b16 %v172
  %v203 = vunpack.c.l.b16 %v173
  %v204 = vunpack.c.l.b16 %v174
  %v205 = vpack.c.b16 %v192, %v191
  %v206 = vpack.c.b16 %v194, %v193
  %v207 = vpack.c.b16 %v196, %v195
  %v208 = vpack.c.b16 %v198, %v197
  %v209 = vpack.c.b16 %v200, %v199
  %v210 = vpack.c.b16 %v202, %v201
  %v211 = vpack.c.b16 %v204, %v203
  %vm219 = vcmask 916480
  %v221 = vsel %vm219, %v160, 0
  %223 = vmatpush.bf16.msra.mxu0 0
  %224 = vmatpush.bf16.msra.mxu0 %v211
  %225 = vmatpush.bf16.msra.mxu0 %v210
  %226 = vmatpush.bf16.msra.mxu0 %v209
  %227 = vmatpush.bf16.msra.mxu0 %v208
  %228 = vmatpush.bf16.msra.mxu0 %v207
  %229 = vmatpush.bf16.msra.mxu0 %v206
  %230 = vmatpush.bf16.msra.mxu0 %v205
  %231 = vmatmul.bf16.gmra.mxu0 %v221
  %v232 = vpop.f32.mrf.mxu0
  %v233 = vadd.f32 %v176, %v232
  %v234 = vpop.f32.mrf.mxu0
  %235 = vdwg.mxu0
  %v236 = vmax.f32 %v233, 0.0
  %v237 = vpack.c.bf16 %v236, %v236
  %v238 = vld [vmem:[%s3 + $0x38] sm:$0xf]
  %v239 = vld [vmem:[%s3 + $0x3c] sm:$0xf]
  %v240 = vld [vmem:[%s3 + $0x40] sm:$0xf]
  %v241 = vld [vmem:[%s3 + $0x44] sm:$0xf]
  %v242 = vld [vmem:[%s4 + $0x2] sm:$0x1]
  %v243 = vperm.slane %v242, 0
  %v248 = vunpack.c.l.b16 %v238
  %v249 = vunpack.c.l.b16 %v239
  %v250 = vunpack.c.l.b16 %v240
  %v251 = vunpack.c.l.b16 %v241
  %v252 = vpack.c.b16 %v249, %v248
  %v253 = vpack.c.b16 %v251, %v250
  %vm256 = vcmask 261120
  %v258 = vsel %vm256, %v237, 0
  %260 = vmatpush.bf16.msra.mxu0 0
  %261 = vmatpush.bf16.msra.mxu0 0
  %262 = vmatpush.bf16.msra.mxu0 0
  %263 = vmatpush.bf16.msra.mxu0 0
  %264 = vmatpush.bf16.msra.mxu0 0
  %265 = vmatpush.bf16.msra.mxu0 0
  %266 = vmatpush.bf16.msra.mxu0 %v253
  %267 = vmatpush.bf16.msra.mxu0 %v252
  %268 = vmatmul.bf16.gmra.mxu0 %v258
  %v269 = vpop.f32.mrf.mxu0
  %v270 = vadd.f32 %v243, %v269
  %v271 = vpop.f32.mrf.mxu0
  %272 = vdwg.mxu0
  %v273 = vmax.f32 %v270, 0.0
  %v274 = vpack.c.bf16 %v273, %v273
  %v275 = vpack.c.bf16 %v159, %v158
  %v277 = vunpack.c.l.b16 %v275
  %v278 = vunpack.c.h.b16 %v275
  %v279 = vpack.c.b16 %v277, %v277
  %v280 = vpack.c.b16 %v278, %v278
  %281 = vrot.lane.b32.xlu0 %v279, 52
  %v282 = vpop.permute.xlu0 %281
  %283 = vrot.lane.b32.xlu0 %v280, 52
  %v284 = vpop.permute.xlu0 %283
  %vm285 = vcmask 424960
  %v286 = vsel %vm285, %v282, %v284
  %v289 = vsel %vm256, %v274, %v286
  %v290 = vld [vmem:[%s3 + $0x48] sm:$0xf]
  %v291 = vld [vmem:[%s3 + $0x4c] sm:$0xf]
  %v292 = vld [vmem:[%s3 + $0x50] sm:$0xf]
  %v293 = vld [vmem:[%s3 + $0x54] sm:$0xf]
  %v294 = vld [vmem:[%s3 + $0x58] sm:$0xf]
  %v295 = vld [vmem:[%s3 + $0x5c] sm:$0xf]
  %v296 = vld [vmem:[%s3 + $0x60] sm:$0xf]
  %v297 = vld [vmem:[%s3 + $0x64] sm:$0xf]
  %v306 = vunpack.c.l.b16 %v290
  %v307 = vunpack.c.l.b16 %v291
  %v308 = vunpack.c.l.b16 %v292
  %v309 = vunpack.c.l.b16 %v293
  %v310 = vunpack.c.l.b16 %v294
  %v311 = vunpack.c.l.b16 %v295
  %v312 = vunpack.c.l.b16 %v296
  %v313 = vunpack.c.l.b16 %v297
  %v314 = vpack.c.b16 %v307, %v306
  %v315 = vpack.c.b16 %v309, %v308
  %v316 = vpack.c.b16 %v311, %v310
  %v317 = vpack.c.b16 %v313, %v312
  %vm322 = vcmask 523264
  %v323 = vsel %vm322, %v289, 0
  %325 = vmatpush.bf16.msra.mxu0 0
  %326 = vmatpush.bf16.msra.mxu0 0
  %327 = vmatpush.bf16.msra.mxu0 0
  %328 = vmatpush.bf16.msra.mxu0 0
  %329 = vmatpush.bf16.msra.mxu0 %v317
  %330 = vmatpush.bf16.msra.mxu0 %v316
  %331 = vmatpush.bf16.msra.mxu0 %v315
  %332 = vmatpush.bf16.msra.mxu0 %v314
  %333 = vmatmul.bf16.gmra.mxu0 %v323
  %v334 = vpop.f32.mrf.mxu0
  %v335 = vadd.f32 0.0, %v334
  %v336 = vpop.f32.mrf.mxu0
  %337 = vdwg.mxu0
  %v338 = vld [vmem:[%s4 + $0x3] sm:$0x1]
  %v339 = vperm.slane %v338, 0
  %v340 = vadd.f32 %v335, %v339
  %vm341 = vcmask 15360
  %342 = vst.msk [vmem:[%s5] sm:$0xff] %vm341, %v340
  // Predicated region
  $region22: #{qtran_mixing_forward.1} parent=0 // pred_check
    _
  $region23: #{qtran_mixing_forward.1} parent=0 // pred_check_branch
    %344 = sbr.rel (0) target = $region25
  $region24: #{qtran_mixing_forward.1} parent=0 // pred_region
    _
  $region25: #{qtran_mixing_forward.1} parent=0 // pred_fallthru
    _
  // Predicated region
  $region26: #{qtran_mixing_forward.1} parent=0 // pred_check
    _
  $region27: #{qtran_mixing_forward.1} parent=0 // pred_check_branch
    %346 = sbr.rel (0) target = $region29
  $region28: #{qtran_mixing_forward.1} parent=0 // pred_region
    _
  $region29: #{qtran_mixing_forward.1} parent=0 // pred_fallthru
    _

</llo_original>
